<compile_context>
chip_gen: v7x
topology: tpu7x:2x2x1
jax: 0.10.0
libtpu: 0.0.40
codegen_flags: <defaults>
</compile_context>

<pallas_src>
import functools
import re

import jax
import jax.numpy as jnp
from jax.experimental import pallas as pl
from jax.experimental.pallas import tpu as pltpu

_LANES = 128


def _tpu_generation():
    """Best-effort TPU generation number (5, 6, 7, ...). None if unknown."""
    try:
        kind = jax.devices()[0].device_kind.lower()
    except Exception:
        return None
    m = re.search(r"(\d+)", kind)
    return int(m.group(1)) if m else None


def _gen_config():
    """Per-generation (target_tile_bytes, bf16_compute_ok)."""
    gen = _tpu_generation()
    if gen is None or gen <= 5:
        # v5e / unknown: 2 MiB tiles (8 MiB double-buffered, fits 16 MiB
        # default scoped VMEM); no bf16 VPU/EUP -> compute in f32.
        return 2 * 1024 * 1024, False
    if gen == 6:
        # v6e: 4 MiB tiles (16 MiB double-buffered, under 32 MiB scoped).
        return 4 * 1024 * 1024, True
    # v7x+: 8 MiB tiles (32 MiB double-buffered) with a raised scoped limit;
    # needed to stay on the HBM-roofline plateau at 3.2 TB/s.
    return 8 * 1024 * 1024, True


def _silu_kernel(x_ref, o_ref, *, beta, compute_dtype):
    z = x_ref[...].astype(compute_dtype)
    if beta != 1.0:  # trace-time specialization; skip the mul for the default beta
        z = z * jnp.asarray(beta, dtype=compute_dtype)
    half = jnp.asarray(0.5, dtype=compute_dtype)
    one = jnp.asarray(1.0, dtype=compute_dtype)
    # sigmoid(z) = 0.5*(tanh(0.5*z)+1): exactly one EUP transcendental / elem.
    sig = half * (jnp.tanh(z * half) + one)
    # z * sigmoid(z) matches PyTorch's in-place semantics (== x*sigmoid(x) @ beta=1).
    o_ref[...] = (z * sig).astype(o_ref.dtype)


def _silu_jnp(v, beta, compute_dtype):
    """Tiny (<128 element) tail path — not worth a kernel launch."""
    z = v.astype(compute_dtype)
    if beta != 1.0:
        z = z * jnp.asarray(beta, dtype=compute_dtype)
    sig = 0.5 * (jnp.tanh(z * 0.5) + 1.0)
    return (z * sig).astype(v.dtype)


def _silu_2d(x2d, beta, compute_dtype, target_tile_bytes):
    """Run the Pallas kernel over a (rows, 128) lane-dense slab."""
    rows = x2d.shape[0]
    itemsize = jnp.dtype(x2d.dtype).itemsize
    # Sublane packing granularity: 8 for 4-byte, 16 for 2-byte, 32 for 1-byte.
    pack = max(8, 32 // max(int(itemsize), 1))

    # Row-block size: ~target_tile_bytes per tile, rounded down to the pack,
    # then clipped so a single block covers small inputs.
    br = (target_tile_bytes // (_LANES * int(itemsize))) // pack * pack
    br = max(br, pack)
    rows_up = ((rows + pack - 1) // pack) * pack
    br = min(br, rows_up)

    block_bytes = br * _LANES * int(itemsize)
    # in + out, double-buffered, plus headroom for compute intermediates.
    vmem_limit = int(min(2 * 2 * block_bytes + (16 << 20), 48 << 20))

    kernel = functools.partial(_silu_kernel, beta=beta, compute_dtype=compute_dtype)

    # NOTE: input_output_aliases={0: 0} would save an HBM allocation when the
    # caller donates x; left unaliased since the caller may still hold x.
    return pl.pallas_call(
        kernel,
        out_shape=jax.ShapeDtypeStruct(x2d.shape, x2d.dtype),
        grid_spec=pltpu.PrefetchScalarGridSpec(
            num_scalar_prefetch=0,
            grid=(pl.cdiv(rows, br),),
            in_specs=[pl.BlockSpec((br, _LANES), lambda i: (i, 0))],
            out_specs=pl.BlockSpec((br, _LANES), lambda i: (i, 0)),
        ),
        compiler_params=pltpu.CompilerParams(
            dimension_semantics=("parallel",),
            vmem_limit_bytes=vmem_limit,
        ),
    )(x2d)


def _silu_impl(x, *, beta):
    orig_shape = x.shape
    dtype = x.dtype
    n = x.size
    if n == 0:
        return x

    itemsize = jnp.dtype(dtype).itemsize
    target_tile_bytes, bf16_ok = _gen_config()

    if dtype == jnp.bfloat16 and bf16_ok:
        compute_dtype = jnp.bfloat16  # bf16 VPU/EUP on v6e/v7x
    elif jnp.issubdtype(dtype, jnp.floating) and itemsize >= 4:
        compute_dtype = dtype
    else:
        compute_dtype = jnp.float32   # fp16 / narrow types / bf16 on v5e

    flat = x.reshape(-1)
    n_head = (n // _LANES) * _LANES

    if n_head == n:
        # Fast path: zero-copy lane-dense (rows, 128) view.
        out = _silu_2d(flat.reshape(n // _LANES, _LANES), beta, compute_dtype,
                       target_tile_bytes)
        return out.reshape(orig_shape)

    if n_head == 0:
        # Entire input is a sub-128-lane tail.
        return _silu_jnp(flat, beta, compute_dtype).reshape(orig_shape)

    # Ragged path: kernel on the multiple-of-128 head, tiny jnp tail, stitch.
    # (No full-array pad copy, no full-array output slice.)
    head = _silu_2d(flat[:n_head].reshape(n_head // _LANES, _LANES), beta,
                    compute_dtype, target_tile_bytes).reshape(-1)
    tail = _silu_jnp(flat[n_head:], beta, compute_dtype)
    return jnp.concatenate([head, tail]).reshape(orig_shape)


@functools.partial(jax.jit, static_argnames=("beta",))
def _silu_pallas_jit(x, beta):
    return _silu_impl(x, beta=beta)


def silu_pallas(x, beta=1.0):
    """Elementwise SiLU via a Pallas TPU kernel. Accepts any shape / float dtype."""
    # TODO(synk): a traced (tensor-valued) beta would need a non-static path;
    # the PyTorch module uses a static Python number (default 1).
    return _silu_pallas_jit(x, beta=float(beta))


class SiLU:
    """JAX/Pallas equivalent of the PyTorch SiLU module (no parameters)."""

    def __init__(self, beta=1):
        self.beta = beta

    def __call__(self, x):
        return silu_pallas(x, beta=self.beta)


def _ref_silu(x, beta=1.0):
    z = x.astype(jnp.float32) * float(beta)
    return z * jax.nn.sigmoid(z)


if __name__ == "__main__":
    key = jax.random.PRNGKey(0)
    # NCHW input, consistent with typical conv feature maps.
    x = jax.random.normal(key, (2, 4, 16, 16), dtype=jnp.float32)

    m = SiLU(beta=1)
    out = jax.block_until_ready(m(x))
    ref = _ref_silu(x, 1.0)
    assert out.shape == x.shape and out.dtype == x.dtype
    assert jnp.allclose(out, ref, atol=2e-6, rtol=2e-6)

    # Non-default beta.
    out_b2 = jax.block_until_ready(silu_pallas(x, beta=1.5))
    assert jnp.allclose(out_b2, _ref_silu(x, 1.5), atol=2e-6, rtol=2e-6)

    # Ragged size (not a multiple of 128): head-kernel + jnp-tail path.
    xr = jax.random.normal(jax.random.PRNGKey(1), (2, 3, 10, 10), dtype=jnp.float32)
    out_r = jax.block_until_ready(silu_pallas(xr, beta=1.0))
    assert out_r.shape == xr.shape
    assert jnp.allclose(out_r, _ref_silu(xr, 1.0), atol=2e-6, rtol=2e-6)

    # bf16 path (bf16 compute on v6e/v7x, f32 upcast on v5e).
    xb = jax.random.normal(jax.random.PRNGKey(2), (2, 4, 16, 16), dtype=jnp.bfloat16)
    out_bf = jax.block_until_ready(silu_pallas(xb, beta=1.0))
    assert out_bf.dtype == jnp.bfloat16
    assert jnp.allclose(
        out_bf.astype(jnp.float32),
        _ref_silu(xb.astype(jnp.float32), 1.0),
        atol=1e-2,
        rtol=1e-2,
    )

    print("KERNEL_OK")
</pallas_src>

<mosaic_0001>
module attributes {stable_mosaic.version = 11 : i64} {
  func.func @_silu_kernel(%arg0: i32, %arg1: memref<16x128xf32, #tpu.memory_space<vmem>>, %arg2: memref<16x128xf32, #tpu.memory_space<vmem>>) attributes {dimension_semantics = [#tpu.dimension_semantics<parallel>], iteration_bounds = array<i64: 1>, scalar_prefetch = 0 : i64, scratch_operands = 0 : i64, tpu.core_type = #tpu.core_type<tc>, window_params = [{transform_indices = @transform_0, window_bounds = array<i64: 16, 128>}, {transform_indices = @transform_1, window_bounds = array<i64: 16, 128>}]} {
    %c0 = arith.constant 0 : index
    %c0_0 = arith.constant 0 : index
    %0 = vector.load %arg1[%c0, %c0_0] : memref<16x128xf32, #tpu.memory_space<vmem>>, vector<16x128xf32>
    %cst = arith.constant 5.000000e-01 : f32
    %1 = vector.broadcast %cst : f32 to vector<16x128xf32>
    %2 = arith.mulf %0, %1 : vector<16x128xf32>
    %3 = math.tanh %2 : vector<16x128xf32>
    %cst_1 = arith.constant 1.000000e+00 : f32
    %4 = vector.broadcast %cst_1 : f32 to vector<16x128xf32>
    %5 = arith.addf %3, %4 : vector<16x128xf32>
    %cst_2 = arith.constant 5.000000e-01 : f32
    %6 = vector.broadcast %cst_2 : f32 to vector<16x128xf32>
    %7 = arith.mulf %6, %5 : vector<16x128xf32>
    %8 = arith.mulf %0, %7 : vector<16x128xf32>
    %c0_3 = arith.constant 0 : index
    %c0_4 = arith.constant 0 : index
    %9 = vector.load %arg2[%c0_3, %c0_4] : memref<16x128xf32, #tpu.memory_space<vmem>>, vector<16x128xf32>
    tpu.vector_store %arg2[%c0_3, %c0_4], %8 {strides = array<i32>} : memref<16x128xf32, #tpu.memory_space<vmem>>, vector<16x128xf32>,
    return
  }
  func.func @transform_0(%arg0: i32) -> (i32, i32) {
    %c0_i32 = arith.constant 0 : i32
    %c0_i32_0 = arith.constant 0 : i32
    return %arg0, %c0_i32 : i32, i32
  }
  func.func @transform_1(%arg0: i32) -> (i32, i32) {
    %c0_i32 = arith.constant 0 : i32
    %c0_i32_0 = arith.constant 0 : i32
    return %arg0, %c0_i32 : i32, i32
  }
}

</mosaic_0001>

<llo_original>
// kernel: _silu_pallas_jit.1
$region0: #{_silu_pallas_jit.1}
  #allocation0 [shape = 'u32[]', space=smem, size = 0x4, offset = 0x4, fixed_abs, tag = 'smem constant byte address 0x4 - core index']
  #allocation1 [shape = 'u32[144,128]{1,0:T(1,128)}', space=vmem, size = 0x12000, scoped, tag = 'internal scratch']
  %s0 = inlined_call_operand.vmem [shape: f32[16,128], index: 0, kind: input, shape index: {}]
  %s1 = inlined_call_operand.vmem [shape: f32[16,128], index: 1, kind: output, shape index: {}]
  %s2 = sld [smem:[#allocation0]]
  $region14: #{_silu_pallas_jit.1} parent=0
    _
  %s4 = ssub.s32 1, %s2
  %s5 = scalar_select 0, %s4, %s2
  // Predicated region
  $region2: #{_silu_pallas_jit.1} parent=0 // pred_check
    _
  $region3: #{_silu_pallas_jit.1} parent=0 // pred_check_branch
    %7 = sbr.rel (0) target = $region5
  $region4: #{_silu_pallas_jit.1} parent=0 // pred_region
    _
  $region5: #{_silu_pallas_jit.1} parent=0 // pred_fallthru
    _
  %v8 = vld [vmem:[%s0] sm:$0xff]
  %v9 = vld [vmem:[%s0 + $0x8] sm:$0xff]
  %v10 = vmul.f32 %v8, 0.5
  %v11 = vmul.f32 %v9, 0.5
  %v12 = vtanh.pop %v10
  %v13 = vtanh.pop %v11
  %v14 = vadd.f32 %v12, 1.0
  %v15 = vadd.f32 %v13, 1.0
  %v16 = vmul.f32 %v14, 0.5
  %v17 = vmul.f32 %v15, 0.5
  %v18 = vmul.f32 %v8, %v16
  %v19 = vmul.f32 %v9, %v17
  %20 = vst [vmem:[%s1] sm:$0xff] %v18
  %21 = vst [vmem:[%s1 + $0x8] sm:$0xff] %v19
  // Predicated region
  $region6: #{_silu_pallas_jit.1} parent=0 // pred_check
    _
  $region7: #{_silu_pallas_jit.1} parent=0 // pred_check_branch
    %23 = sbr.rel (0) target = $region9
  $region8: #{_silu_pallas_jit.1} parent=0 // pred_region
    _
  $region9: #{_silu_pallas_jit.1} parent=0 // pred_fallthru
    _
  // Predicated region
  $region10: #{_silu_pallas_jit.1} parent=0 // pred_check
    _
  $region11: #{_silu_pallas_jit.1} parent=0 // pred_check_branch
    %25 = sbr.rel (0) target = $region13
  $region12: #{_silu_pallas_jit.1} parent=0 // pred_region
    _
  $region13: #{_silu_pallas_jit.1} parent=0 // pred_fallthru
    _

</llo_original>
